<compile_context>
chip_gen: v7x
topology: tpu7x:2x2x1
jax: 0.10.0
libtpu: 0.0.40
codegen_flags: <defaults>
</compile_context>

<pallas_src>
import numpy as np
import jax
import jax.numpy as jnp
from jax.experimental import pallas as pl
from jax.experimental.pallas import tpu as pltpu


def _make_kernel(nb, rows, dbig, width, inv_n, eps):
    def kernel(p_ref, w_ref, prm_ref, o_ref):
        # p_ref  : (nb, rows, dbig)   bf16  polyphase patches, nb samples
        # w_ref  : (dbig, width)      bf16  block-diagonal phase-packed weights
        # prm_ref: (8, width)         f32   rows: 0=bias 1=gamma 2=beta 3=mask
        # o_ref  : (nb, rows, width)  f32   lane-dense output slab
        prm = prm_ref[...]
        b, g, bt, mk = prm[0:1], prm[1:2], prm[2:3], prm[3:4]

        # One MXU matmul for all nb samples of this grid step (bf16 in, f32 acc).
        p = p_ref[...].reshape(nb * rows, dbig)
        y = jnp.dot(p, w_ref[...], preferred_element_type=jnp.float32)
        y = y.reshape(nb, rows, width) + b            # conv bias (lane broadcast)

        # Per-sample LayerNorm over (C,H,W), biased variance (torch semantics).
        # mk zeroes lane-padding columns out of the statistics; it is all-ones
        # on the fast path so the extra VPU mul is free filler under the DMA.
        ym = y * mk
        mu = jnp.sum(jnp.sum(ym, axis=2, keepdims=True),
                     axis=1, keepdims=True) * inv_n
        yc = y - mu
        v2 = yc * yc * mk
        var = jnp.sum(jnp.sum(v2, axis=2, keepdims=True),
                      axis=1, keepdims=True) * inv_n
        z = yc * jax.lax.rsqrt(var + eps)
        o_ref[...] = jnp.maximum(z * g + bt, 0.0)     # affine + ReLU

    return kernel


def _polyphase_shifts(s, p, K):
    return sorted({(r + p - k) // s for r in range(s) for k in range(K)
                   if (r + p - k) % s == 0})


def _choose_row_pack(M, D, n_pos, target_depth=256, max_w_bytes=8 << 20):
    """R = output positions packed per lane-dense row.

    Requires width = R*M to be a multiple of 128 (unmasked stores) and R to
    divide Hp*Wp.  Prefer the smallest R whose contraction depth Dbig = R*D
    reaches the MXU depth (256 on v6e/v7x), while bounding the block-diagonal
    weight footprint (grows ~R^2).  Returns None if no such R exists.
    """
    best = None
    for R in range(1, n_pos + 1):
        if n_pos % R or (R * M) % 128:
            continue
        if 2 * (R * D) * (R * M) > max_w_bytes:   # bf16 weight bytes cap
            break
        best = R
        if R * D >= target_depth:
            break
    return best


def _default_num_steps(N):
    # v7x has 2 TensorCores per chip: keep 2 "parallel" grid steps when the
    # batch allows it.  v5e/v6e are single-TC: collapse to one step so the
    # ~0.35us/step grid overhead is paid once.
    try:
        kind = jax.devices()[0].device_kind.lower()
    except Exception:
        kind = ""
    two_tc = ("v7" in kind) or ("7x" in kind)
    if two_tc and N >= 2 and N % 2 == 0:
        return 2
    return 1


def relu_ln_convT2d(x_nchw, weight, bias, gamma, beta, *,
                    stride, padding, output_padding, eps=1e-5, num_steps=None):
    """weight: (C_in, C_out, K, K) as in torch.nn.ConvTranspose2d."""
    N, C_in, H_in, W_in = x_nchw.shape
    C_in_w, C_out, K, K2 = weight.shape
    assert C_in == C_in_w and K == K2
    s, p, op = stride, padding, output_padding
    assert op < s, "torch requires output_padding < stride"

    H_out = (H_in - 1) * s - 2 * p + K + op
    W_out = (W_in - 1) * s - 2 * p + K + op
    # TODO(synk): ragged phases (H_out % s != 0) need per-row masking of the LN
    # statistics; DRIT++ decoder configs satisfy the divisibility.
    assert H_out % s == 0 and W_out % s == 0, "phase-uniform fast path only"

    Hp, Wp = H_out // s, W_out // s
    P = s * s                          # number of output phases
    M = P * C_out                      # phase-packed channels per position
    DH = _polyphase_shifts(s, p, K)
    DW = DH                            # symmetric kernel/stride/padding
    D = len(DH) * len(DW) * C_in       # patch contraction width per position
    n_pos = Hp * Wp

    R = _choose_row_pack(M, D, n_pos)
    if R is None:
        # Fallback: 1 position per row, pad the lane dim to a multiple of 128
        # with zero weight columns; mask removes them from the LN statistics.
        R = 1
        width = ((M + 127) // 128) * 128
    else:
        width = R * M
    width_real = R * M
    rows = n_pos // R
    Dbig = R * D

    G = _default_num_steps(N) if num_steps is None else num_steps
    assert N % G == 0
    NB = N // G

    # --- wrapper-side layout plumbing (bf16 to halve HBM traffic) ------------
    x = jnp.transpose(x_nchw, (0, 2, 3, 1)).astype(jnp.bfloat16)        # NHWC
    off_h = max(0, -min(DH)); hi_h = max(0, (Hp - 1) + max(DH) - (H_in - 1))
    off_w = max(0, -min(DW)); hi_w = max(0, (Wp - 1) + max(DW) - (W_in - 1))
    x_pad = jnp.pad(x, ((0, 0), (off_h, hi_h), (off_w, hi_w), (0, 0)))
    # TODO(synk): for production decoder sizes gather these shifted windows
    # inside the kernel (memory_space=pl.ANY + make_async_copy) instead of
    # materializing a |DH|*|DW|x-input patch tensor in HBM.
    shifted = [x_pad[:, dh + off_h:dh + off_h + Hp,
                     dw + off_w:dw + off_w + Wp, :]
               for dh in DH for dw in DW]
    patch = jnp.concatenate(shifted, axis=-1)                           # (N,Hp,Wp,D)
    patch = patch.reshape(N, rows, Dbig)                                # lane packing

    # --- phase-packed block-diagonal weights (host-side, concrete params) ----
    w_np = np.asarray(weight, np.float32)
    W_all = np.zeros((D, M), np.float32)
    for rh in range(s):
        for kh in range(K):
            if (rh + p - kh) % s:
                continue
            ih = DH.index((rh + p - kh) // s)
            for rw in range(s):
                for kw in range(K):
                    if (rw + p - kw) % s:
                        continue
                    iw = DW.index((rw + p - kw) // s)
                    sh = ih * len(DW) + iw
                    ph = rh * s + rw
                    W_all[sh * C_in:(sh + 1) * C_in,
                          ph * C_out:(ph + 1) * C_out] = w_np[:, :, kh, kw]
    W_big = np.zeros((Dbig, width), np.float32)
    W_big[:, :width_real] = np.kron(np.eye(R, dtype=np.float32), W_all)
    W_big = jnp.asarray(W_big, dtype=jnp.bfloat16)

    # bias / gamma / beta / mask merged into a single (8, width) VMEM input.
    rep = width_real // C_out
    prm = np.zeros((8, width), np.float32)
    prm[0, :width_real] = np.tile(np.asarray(bias, np.float32), rep)
    prm[1, :width_real] = np.tile(np.asarray(gamma, np.float32), rep)
    prm[2, :width_real] = np.tile(np.asarray(beta, np.float32), rep)
    prm[3, :width_real] = 1.0
    prm = jnp.asarray(prm)

    inv_n = 1.0 / float(H_out * W_out * C_out)
    kernel = _make_kernel(NB, rows, Dbig, width, inv_n, eps)

    patch_bytes = NB * rows * Dbig * 2
    out_bytes = NB * rows * width * 4
    w_bytes = Dbig * width * 2
    prm_bytes = 8 * width * 4
    vmem_need = 2 * (patch_bytes + out_bytes) + 2 * (w_bytes + prm_bytes) + (1 << 20)
    vmem_limit = int(min(max(vmem_need, 16 << 20), 64 << 20))
    cost = pl.CostEstimate(
        flops=2 * N * rows * Dbig * width,
        transcendentals=N,
        bytes_accessed=N * rows * Dbig * 2 + G * (w_bytes + prm_bytes)
        + N * rows * width * 4,
    )

    # TODO(synk): for production shapes add a row-tile grid axis ("arbitrary")
    # with two-phase LayerNorm stats (sum/sumsq scratch, then normalize pass)
    # so a whole sample never needs to sit in VMEM (matters on v7x's 64 MiB).
    out_flat = pl.pallas_call(
        kernel,
        out_shape=jax.ShapeDtypeStruct((N, rows, width), jnp.float32),
        grid=(G,),
        in_specs=[
            pl.BlockSpec((NB, rows, Dbig), lambda g: (g, 0, 0)),
            pl.BlockSpec((Dbig, width), lambda g: (0, 0)),
            pl.BlockSpec((8, width), lambda g: (0, 0)),
        ],
        out_specs=pl.BlockSpec((NB, rows, width), lambda g: (g, 0, 0)),
        compiler_params=pltpu.CompilerParams(
            dimension_semantics=("parallel",),
            vmem_limit_bytes=vmem_limit),
        cost_estimate=cost,
    )(patch, W_big, prm)

    # Un-pack with a single fused transpose: (N, rows, width) -> NCHW.
    if width != width_real:
        out_flat = out_flat[:, :, :width_real]
    out6 = out_flat.reshape(N, Hp, Wp, s, s, C_out)
    return out6.transpose(0, 5, 1, 3, 2, 4).reshape(N, C_out, H_out, W_out)


def _reference(x_nchw, weight, bias, gamma, beta, *, stride, padding,
               output_padding, eps=1e-5):
    """Pure-JAX/XLA reference for the same forward pass."""
    C_in, C_out, K, _ = weight.shape
    s, p, op = stride, padding, output_padding
    lo = K - 1 - p
    hi = K - 1 - p + op
    rhs = jnp.transpose(weight[:, :, ::-1, ::-1], (1, 0, 2, 3))         # (C_out,C_in,K,K)
    dn = jax.lax.conv_dimension_numbers(x_nchw.shape, rhs.shape,
                                        ('NCHW', 'OIHW', 'NCHW'))
    conv = jax.lax.conv_general_dilated(
        x_nchw.astype(jnp.float32), rhs.astype(jnp.float32),
        window_strides=(1, 1), padding=[(lo, hi), (lo, hi)],
        lhs_dilation=(s, s), dimension_numbers=dn)
    conv = conv + bias[None, :, None, None]
    mu = conv.mean(axis=(1, 2, 3), keepdims=True)
    var = ((conv - mu) ** 2).mean(axis=(1, 2, 3), keepdims=True)
    y = (conv - mu) / jnp.sqrt(var + eps)
    y = y * gamma[None, :, None, None] + beta[None, :, None, None]
    return jnp.maximum(y, 0.0)


if __name__ == "__main__":
    # module config (typical DRIT++ upsampling block)
    in_ch, out_ch = 4, 8
    kernel_size, stride, padding, output_padding = 3, 2, 1, 1
    N, H, W = 2, 16, 16

    key = jax.random.PRNGKey(0)
    kx, kw, kb = jax.random.split(key, 3)

    # gaussian_weights_init -> N(0, 0.02) for the ConvTranspose weight
    weight = 0.02 * jax.random.normal(
        kw, (in_ch, out_ch, kernel_size, kernel_size), jnp.float32)
    bias = 0.01 * jax.random.normal(kb, (out_ch,), jnp.float32)
    gamma = jnp.ones((out_ch,), jnp.float32)    # LayerNorm weight
    beta = jnp.zeros((out_ch,), jnp.float32)    # LayerNorm bias

    x = jax.random.normal(kx, (N, in_ch, H, W), jnp.float32)

    out = relu_ln_convT2d(x, weight, bias, gamma, beta,
                          stride=stride, padding=padding,
                          output_padding=output_padding)
    out = jax.block_until_ready(out)

    H_out = (H - 1) * stride - 2 * padding + kernel_size + output_padding
    W_out = (W - 1) * stride - 2 * padding + kernel_size + output_padding
    assert out.shape == (N, out_ch, H_out, W_out)

    # Structural check: reference fed the same bf16-quantized MXU operands.
    xq = x.astype(jnp.bfloat16).astype(jnp.float32)
    wq = weight.astype(jnp.bfloat16).astype(jnp.float32)
    ref_q = _reference(xq, wq, bias, gamma, beta, stride=stride,
                       padding=padding, output_padding=output_padding)
    assert jnp.allclose(out, ref_q, rtol=1e-3, atol=1e-3), \
        float(jnp.max(jnp.abs(out - ref_q)))

    # Sanity check vs the full-f32 module (loose: bf16 operand quantization).
    ref = _reference(x, weight, bias, gamma, beta, stride=stride,
                     padding=padding, output_padding=output_padding)
    assert jnp.allclose(out, ref, rtol=1e-1, atol=1e-1), \
        float(jnp.max(jnp.abs(out - ref)))

    print("KERNEL_OK")
</pallas_src>

<mosaic_0001>
module attributes {stable_mosaic.version = 11 : i64} {
  func.func @kernel(%arg0: i32, %arg1: memref<2x16x256xbf16, #tpu.memory_space<vmem>>, %arg2: memref<256x512xbf16, #tpu.memory_space<vmem>>, %arg3: memref<8x512xf32, #tpu.memory_space<vmem>>, %arg4: memref<2x16x512xf32, #tpu.memory_space<vmem>>) attributes {dimension_semantics = [#tpu.dimension_semantics<parallel>], iteration_bounds = array<i64: 1>, scalar_prefetch = 0 : i64, scratch_operands = 0 : i64, tpu.core_type = #tpu.core_type<tc>, window_params = [{transform_indices = @transform_0, window_bounds = array<i64: 2, 16, 256>}, {pipeline_mode = #tpu.pipeline_mode<synchronous>, transform_indices = @transform_1, window_bounds = array<i64: 256, 512>}, {pipeline_mode = #tpu.pipeline_mode<synchronous>, transform_indices = @transform_2, window_bounds = array<i64: 8, 512>}, {transform_indices = @transform_3, window_bounds = array<i64: 2, 16, 512>}]} {
    %c0 = arith.constant 0 : index
    %c0_0 = arith.constant 0 : index
    %0 = vector.load %arg3[%c0, %c0_0] : memref<8x512xf32, #tpu.memory_space<vmem>>, vector<8x512xf32>
    %1 = vector.extract_strided_slice %0 {offsets = [0, 0], sizes = [1, 512], strides = [1, 1]} : vector<8x512xf32> to vector<1x512xf32>
    %2 = vector.extract_strided_slice %0 {offsets = [1, 0], sizes = [1, 512], strides = [1, 1]} : vector<8x512xf32> to vector<1x512xf32>
    %3 = vector.extract_strided_slice %0 {offsets = [2, 0], sizes = [1, 512], strides = [1, 1]} : vector<8x512xf32> to vector<1x512xf32>
    %4 = vector.extract_strided_slice %0 {offsets = [3, 0], sizes = [1, 512], strides = [1, 1]} : vector<8x512xf32> to vector<1x512xf32>
    %c0_1 = arith.constant 0 : index
    %c0_2 = arith.constant 0 : index
    %c0_3 = arith.constant 0 : index
    %5 = vector.load %arg1[%c0_1, %c0_2, %c0_3] : memref<2x16x256xbf16, #tpu.memory_space<vmem>>, vector<2x16x256xbf16>
    %6 = vector.shape_cast %5 : vector<2x16x256xbf16> to vector<32x256xbf16>
    %c0_4 = arith.constant 0 : index
    %c0_5 = arith.constant 0 : index
    %7 = vector.load %arg2[%c0_4, %c0_5] : memref<256x512xbf16, #tpu.memory_space<vmem>>, vector<256x512xbf16>
    %cst = arith.constant dense<0.000000e+00> : vector<32x512xf32>
    %8 = tpu.matmul %6, %7, %cst {dimension_numbers = #tpu.dot_dimension_numbers<[1], [0], [0], [1], [0, 0, 1, 1], [], []>} : vector<32x256xbf16>, vector<256x512xbf16>, vector<32x512xf32> -> vector<32x512xf32>
    %9 = vector.shape_cast %8 : vector<32x512xf32> to vector<2x16x512xf32>
    %10 = vector.shape_cast %1 : vector<1x512xf32> to vector<1x1x512xf32>
    %11 = vector.broadcast %10 : vector<1x1x512xf32> to vector<2x16x512xf32>
    %12 = arith.addf %9, %11 : vector<2x16x512xf32>
    %13 = vector.shape_cast %4 : vector<1x512xf32> to vector<1x1x512xf32>
    %14 = vector.broadcast %13 : vector<1x1x512xf32> to vector<2x16x512xf32>
    %15 = arith.mulf %12, %14 : vector<2x16x512xf32>
    %cst_6 = arith.constant dense<0.000000e+00> : vector<2x16xf32>
    %16 = vector.multi_reduction <add>, %15, %cst_6 [2] : vector<2x16x512xf32> to vector<2x16xf32>
    %17 = vector.shape_cast %16 : vector<2x16xf32> to vector<2x16x1xf32>
    %cst_7 = arith.constant dense<0.000000e+00> : vector<2x1xf32>
    %18 = vector.multi_reduction <add>, %17, %cst_7 [1] : vector<2x16x1xf32> to vector<2x1xf32>
    %19 = vector.shape_cast %18 : vector<2x1xf32> to vector<2x1x1xf32>
    %cst_8 = arith.constant 1.22070313E-4 : f32
    %20 = vector.broadcast %cst_8 : f32 to vector<2x1x1xf32>
    %21 = arith.mulf %19, %20 : vector<2x1x1xf32>
    %22 = vector.broadcast %21 : vector<2x1x1xf32> to vector<2x16x512xf32>
    %23 = arith.subf %12, %22 : vector<2x16x512xf32>
    %24 = arith.mulf %23, %23 : vector<2x16x512xf32>
    %25 = vector.shape_cast %4 : vector<1x512xf32> to vector<1x1x512xf32>
    %26 = vector.broadcast %25 : vector<1x1x512xf32> to vector<2x16x512xf32>
    %27 = arith.mulf %24, %26 : vector<2x16x512xf32>
    %cst_9 = arith.constant dense<0.000000e+00> : vector<2x16xf32>
    %28 = vector.multi_reduction <add>, %27, %cst_9 [2] : vector<2x16x512xf32> to vector<2x16xf32>
    %29 = vector.shape_cast %28 : vector<2x16xf32> to vector<2x16x1xf32>
    %cst_10 = arith.constant dense<0.000000e+00> : vector<2x1xf32>
    %30 = vector.multi_reduction <add>, %29, %cst_10 [1] : vector<2x16x1xf32> to vector<2x1xf32>
    %31 = vector.shape_cast %30 : vector<2x1xf32> to vector<2x1x1xf32>
    %cst_11 = arith.constant 1.22070313E-4 : f32
    %32 = vector.broadcast %cst_11 : f32 to vector<2x1x1xf32>
    %33 = arith.mulf %31, %32 : vector<2x1x1xf32>
    %cst_12 = arith.constant 9.99999974E-6 : f32
    %34 = vector.broadcast %cst_12 : f32 to vector<2x1x1xf32>
    %35 = arith.addf %33, %34 : vector<2x1x1xf32>
    %36 = math.rsqrt %35 : vector<2x1x1xf32>
    %37 = vector.broadcast %36 : vector<2x1x1xf32> to vector<2x16x512xf32>
    %38 = arith.mulf %23, %37 : vector<2x16x512xf32>
    %39 = vector.shape_cast %2 : vector<1x512xf32> to vector<1x1x512xf32>
    %40 = vector.broadcast %39 : vector<1x1x512xf32> to vector<2x16x512xf32>
    %41 = arith.mulf %38, %40 : vector<2x16x512xf32>
    %42 = vector.shape_cast %3 : vector<1x512xf32> to vector<1x1x512xf32>
    %43 = vector.broadcast %42 : vector<1x1x512xf32> to vector<2x16x512xf32>
    %44 = arith.addf %41, %43 : vector<2x16x512xf32>
    %cst_13 = arith.constant 0.000000e+00 : f32
    %45 = vector.broadcast %cst_13 : f32 to vector<2x16x512xf32>
    %46 = arith.maximumf %44, %45 : vector<2x16x512xf32>
    %c0_14 = arith.constant 0 : index
    %c0_15 = arith.constant 0 : index
    %c0_16 = arith.constant 0 : index
    %47 = vector.load %arg4[%c0_14, %c0_15, %c0_16] : memref<2x16x512xf32, #tpu.memory_space<vmem>>, vector<2x16x512xf32>
    tpu.vector_store %arg4[%c0_14, %c0_15, %c0_16], %46 {strides = array<i32>} : memref<2x16x512xf32, #tpu.memory_space<vmem>>, vector<2x16x512xf32>,
    return
  }
  func.func @transform_0(%arg0: i32) -> (i32, i32, i32) {
    %c0_i32 = arith.constant 0 : i32
    %c0_i32_0 = arith.constant 0 : i32
    %c0_i32_1 = arith.constant 0 : i32
    return %arg0, %c0_i32, %c0_i32_0 : i32, i32, i32
  }
  func.func @transform_1(%arg0: i32) -> (i32, i32) {
    %c0_i32 = arith.constant 0 : i32
    %c0_i32_0 = arith.constant 0 : i32
    %c0_i32_1 = arith.constant 0 : i32
    return %c0_i32, %c0_i32_0 : i32, i32
  }
  func.func @transform_2(%arg0: i32) -> (i32, i32) {
    %c0_i32 = arith.constant 0 : i32
    %c0_i32_0 = arith.constant 0 : i32
    %c0_i32_1 = arith.constant 0 : i32
    return %c0_i32, %c0_i32_0 : i32, i32
  }
  func.func @transform_3(%arg0: i32) -> (i32, i32, i32) {
    %c0_i32 = arith.constant 0 : i32
    %c0_i32_0 = arith.constant 0 : i32
    %c0_i32_1 = arith.constant 0 : i32
    return %arg0, %c0_i32, %c0_i32_0 : i32, i32, i32
  }
}

</mosaic_0001>

<llo_original>
// kernel: tpu_custom_call.1
$region0: #{tpu_custom_call.1}
  #allocation0 [shape = 'u32[]', space=smem, size = 0x4, offset = 0x4, fixed_abs, tag = 'smem constant byte address 0x4 - core index']
  #allocation1 [shape = 'u32[144,128]{1,0:T(1,128)}', space=vmem, size = 0x12000, scoped, tag = 'internal scratch']
  %s0 = inlined_call_operand.hbm [shape: bf16[2,16,256], index: 0, kind: input, shape index: {}]
  %s1 = inlined_call_operand.hbm [shape: bf16[256,512], index: 1, kind: input, shape index: {}]
  %s2 = inlined_call_operand.hbm [shape: f32[8,512], index: 2, kind: input, shape index: {}]
  %s3 = inlined_call_operand.hbm [shape: f32[2,16,512], index: 3, kind: output, shape index: {}]
  %s4 = sld [smem:[#allocation0]]
  $region34: #{tpu_custom_call.1} parent=0
    _
  %s6 = ssub.s32 1, %s4
  %s7 = scalar_select 0, %s6, %s4
  $region1: #{tpu_custom_call.1} parent=0
    #allocation2 [shape = 'u8[16384]{0}', space=vmem, size = 0x4000, scoped, tag = 'input window, operand 0, single buffered']
    #allocation3 [shape = 's32[1]{0}', space=sflag, size = 0x4, scoped, tag = 'scoped memory for tpu_custom_call.1']
    #allocation4 [shape = 's32[1]{0}', space=sflag, size = 0x4, scoped, tag = 'scoped memory for tpu_custom_call.1']
    #allocation5 [shape = 'u8[262144]{0}', space=vmem, size = 0x40000, scoped, tag = 'input window, operand 1, single buffered']
    #allocation6 [shape = 's32[1]{0}', space=sflag, size = 0x4, scoped, tag = 'scoped memory for tpu_custom_call.1']
    #allocation7 [shape = 'u8[16384]{0}', space=vmem, size = 0x4000, scoped, tag = 'input window, operand 2, single buffered']
    #allocation8 [shape = 'u8[65536]{0}', space=vmem, size = 0x10000, scoped, tag = 'output window, operand 0, single buffered']
    %8 = vsyncpa [#allocation3], 0
    %9 = vsyncpa [#allocation6], 0
    %10 = vsyncpa [#allocation4], 0
    // Predicated region
    $region2: #{tpu_custom_call.1} parent=1 // pred_check
      _
    $region3: #{tpu_custom_call.1} parent=1 // pred_check_branch
      %12 = sbr.rel (0) target = $region5
    $region4: #{tpu_custom_call.1} parent=1 // pred_region
      %s14 = ssub.s32 512, 512
      %15 = vsyncadd [#allocation3], %s14
      %s16 = sshll.u32 [#allocation2], 4
      %s17 = int_to_ptr.vmem [resolvable:$true] %s16
      %22 = dma.hbm_to_vmem [thread:$0]  %s0, 512, %s17, [#allocation3], 128, 128, 8
    $region5: #{tpu_custom_call.1} parent=1 // pred_fallthru
      _
    // Predicated region
    $region6: #{tpu_custom_call.1} parent=1 // pred_check
      _
    $region7: #{tpu_custom_call.1} parent=1 // pred_check_branch
      %24 = sbr.rel (0) target = $region9
    $region8: #{tpu_custom_call.1} parent=1 // pred_region
      %s26 = ssub.s32 8192, 8192
      %27 = vsyncadd [#allocation6], %s26
      %s28 = sshll.u32 [#allocation5], 4
      %s29 = int_to_ptr.vmem [resolvable:$true] %s28
      %34 = dma.hbm_to_vmem [thread:$0]  %s1, 8192, %s29, [#allocation6], 256, 256, 16
    $region9: #{tpu_custom_call.1} parent=1 // pred_fallthru
      _
    // Predicated region
    $region10: #{tpu_custom_call.1} parent=1 // pred_check
      _
    $region11: #{tpu_custom_call.1} parent=1 // pred_check_branch
      %36 = sbr.rel (0) target = $region13
    $region12: #{tpu_custom_call.1} parent=1 // pred_region
      %s38 = ssub.s32 512, 512
      %39 = vsyncadd [#allocation6], %s38
      %s41 = sshll.u32 [#allocation7], 4
      %s42 = int_to_ptr.vmem [resolvable:$true] %s41
      %44 = dma.hbm_to_vmem [thread:$0]  %s2, 512, %s42, [#allocation6]
    $region13: #{tpu_custom_call.1} parent=1 // pred_fallthru
      _
    // Predicated region
    $region14: #{tpu_custom_call.1} parent=1 // pred_check
      _
    $region15: #{tpu_custom_call.1} parent=1 // pred_check_branch
      %46 = sbr.rel (0) target = $region17
    $region16: #{tpu_custom_call.1} parent=1 // pred_region
      %47 = dma.done [#allocation3], 512
    $region17: #{tpu_custom_call.1} parent=1 // pred_fallthru
      _
    // Predicated region
    $region18: #{tpu_custom_call.1} parent=1 // pred_check
      _
    $region19: #{tpu_custom_call.1} parent=1 // pred_check_branch
      %49 = sbr.rel (0) target = $region21
    $region20: #{tpu_custom_call.1} parent=1 // pred_region
      %50 = dma.done [#allocation6], 8192
    $region21: #{tpu_custom_call.1} parent=1 // pred_fallthru
      _
    // Predicated region
    $region22: #{tpu_custom_call.1} parent=1 // pred_check
      _
    $region23: #{tpu_custom_call.1} parent=1 // pred_check_branch
      %52 = sbr.rel (0) target = $region25
    $region24: #{tpu_custom_call.1} parent=1 // pred_region
      %53 = dma.done [#allocation6], 512
    $region25: #{tpu_custom_call.1} parent=1 // pred_fallthru
      _
    %v54 = vld [vmem:[#allocation7] sm:$0xff]
    %v55 = vld [vmem:[#allocation7 + $0x8] sm:$0xff]
    %v56 = vld [vmem:[#allocation7 + $0x10] sm:$0xff]
    %v57 = vld [vmem:[#allocation7 + $0x18] sm:$0xff]
    %v58 = vld [vmem:[#allocation2] sm:$0xff]
    %v59 = vld [vmem:[#allocation2 + $0x8] sm:$0xff]
    %v60 = vld [vmem:[#allocation2 + $0x10] sm:$0xff]
    %v61 = vld [vmem:[#allocation2 + $0x18] sm:$0xff]
    %v62 = vld [vmem:[#allocation5] sm:$0xff]
    %v63 = vld [vmem:[#allocation5 + $0x8] sm:$0xff]
    %v64 = vld [vmem:[#allocation5 + $0x10] sm:$0xff]
    %v65 = vld [vmem:[#allocation5 + $0x18] sm:$0xff]
    %v66 = vld [vmem:[#allocation5 + $0x20] sm:$0xff]
    %v67 = vld [vmem:[#allocation5 + $0x28] sm:$0xff]
    %v68 = vld [vmem:[#allocation5 + $0x30] sm:$0xff]
    %v69 = vld [vmem:[#allocation5 + $0x38] sm:$0xff]
    %v70 = vld [vmem:[#allocation5 + $0x40] sm:$0xff]
    %v71 = vld [vmem:[#allocation5 + $0x48] sm:$0xff]
    %v72 = vld [vmem:[#allocation5 + $0x50] sm:$0xff]
    %v73 = vld [vmem:[#allocation5 + $0x58] sm:$0xff]
    %v74 = vld [vmem:[#allocation5 + $0x60] sm:$0xff]
    %v75 = vld [vmem:[#allocation5 + $0x68] sm:$0xff]
    %v76 = vld [vmem:[#allocation5 + $0x70] sm:$0xff]
    %v77 = vld [vmem:[#allocation5 + $0x78] sm:$0xff]
    %v78 = vld [vmem:[#allocation5 + $0x80] sm:$0xff]
    %v79 = vld [vmem:[#allocation5 + $0x88] sm:$0xff]
    %v80 = vld [vmem:[#allocation5 + $0x90] sm:$0xff]
    %v81 = vld [vmem:[#allocation5 + $0x98] sm:$0xff]
    %v82 = vld [vmem:[#allocation5 + $0xa0] sm:$0xff]
    %v83 = vld [vmem:[#allocation5 + $0xa8] sm:$0xff]
    %v84 = vld [vmem:[#allocation5 + $0xb0] sm:$0xff]
    %v85 = vld [vmem:[#allocation5 + $0xb8] sm:$0xff]
    %v86 = vld [vmem:[#allocation5 + $0xc0] sm:$0xff]
    %v87 = vld [vmem:[#allocation5 + $0xc8] sm:$0xff]
    %v88 = vld [vmem:[#allocation5 + $0xd0] sm:$0xff]
    %v89 = vld [vmem:[#allocation5 + $0xd8] sm:$0xff]
    %v90 = vld [vmem:[#allocation5 + $0xe0] sm:$0xff]
    %v91 = vld [vmem:[#allocation5 + $0xe8] sm:$0xff]
    %v92 = vld [vmem:[#allocation5 + $0xf0] sm:$0xff]
    %v93 = vld [vmem:[#allocation5 + $0xf8] sm:$0xff]
    %v94 = vld [vmem:[#allocation5 + $0x100] sm:$0xff]
    %v95 = vld [vmem:[#allocation5 + $0x108] sm:$0xff]
    %v96 = vld [vmem:[#allocation5 + $0x110] sm:$0xff]
    %v97 = vld [vmem:[#allocation5 + $0x118] sm:$0xff]
    %v98 = vld [vmem:[#allocation5 + $0x120] sm:$0xff]
    %v99 = vld [vmem:[#allocation5 + $0x128] sm:$0xff]
    %v100 = vld [vmem:[#allocation5 + $0x130] sm:$0xff]
    %v101 = vld [vmem:[#allocation5 + $0x138] sm:$0xff]
    %v102 = vld [vmem:[#allocation5 + $0x140] sm:$0xff]
    %v103 = vld [vmem:[#allocation5 + $0x148] sm:$0xff]
    %v104 = vld [vmem:[#allocation5 + $0x150] sm:$0xff]
    %v105 = vld [vmem:[#allocation5 + $0x158] sm:$0xff]
    %v106 = vld [vmem:[#allocation5 + $0x160] sm:$0xff]
    %v107 = vld [vmem:[#allocation5 + $0x168] sm:$0xff]
    %v108 = vld [vmem:[#allocation5 + $0x170] sm:$0xff]
    %v109 = vld [vmem:[#allocation5 + $0x178] sm:$0xff]
    %v110 = vld [vmem:[#allocation5 + $0x180] sm:$0xff]
    %v111 = vld [vmem:[#allocation5 + $0x188] sm:$0xff]
    %v112 = vld [vmem:[#allocation5 + $0x190] sm:$0xff]
    %v113 = vld [vmem:[#allocation5 + $0x198] sm:$0xff]
    %v114 = vld [vmem:[#allocation5 + $0x1a0] sm:$0xff]
    %v115 = vld [vmem:[#allocation5 + $0x1a8] sm:$0xff]
    %v116 = vld [vmem:[#allocation5 + $0x1b0] sm:$0xff]
    %v117 = vld [vmem:[#allocation5 + $0x1b8] sm:$0xff]
    %v118 = vld [vmem:[#allocation5 + $0x1c0] sm:$0xff]
    %v119 = vld [vmem:[#allocation5 + $0x1c8] sm:$0xff]
    %v120 = vld [vmem:[#allocation5 + $0x1d0] sm:$0xff]
    %v121 = vld [vmem:[#allocation5 + $0x1d8] sm:$0xff]
    %v122 = vld [vmem:[#allocation5 + $0x1e0] sm:$0xff]
    %v123 = vld [vmem:[#allocation5 + $0x1e8] sm:$0xff]
    %v124 = vld [vmem:[#allocation5 + $0x1f0] sm:$0xff]
    %v125 = vld [vmem:[#allocation5 + $0x1f8] sm:$0xff]
    %v130 = vunpack.c.l.b16 %v58
    %v131 = vunpack.c.h.b16 %v58
    %v132 = vunpack.c.l.b16 %v59
    %v133 = vunpack.c.h.b16 %v59
    %v134 = vunpack.c.l.b16 %v60
    %v135 = vunpack.c.h.b16 %v60
    %v136 = vunpack.c.l.b16 %v61
    %v137 = vunpack.c.h.b16 %v61
    %v138 = vpack.c.b16 %v132, %v130
    %v139 = vpack.c.b16 %v133, %v131
    %v140 = vpack.c.b16 %v136, %v134
    %v141 = vpack.c.b16 %v137, %v135
    %v210 = vunpack.c.l.b16 %v62
    %v211 = vunpack.c.h.b16 %v62
    %v212 = vunpack.c.l.b16 %v63
    %v213 = vunpack.c.h.b16 %v63
    %v214 = vunpack.c.l.b16 %v64
    %v215 = vunpack.c.h.b16 %v64
    %v216 = vunpack.c.l.b16 %v65
    %v217 = vunpack.c.h.b16 %v65
    %v218 = vunpack.c.l.b16 %v66
    %v219 = vunpack.c.h.b16 %v66
    %v220 = vunpack.c.l.b16 %v67
    %v221 = vunpack.c.h.b16 %v67
    %v222 = vunpack.c.l.b16 %v68
    %v223 = vunpack.c.h.b16 %v68
    %v224 = vunpack.c.l.b16 %v69
    %v225 = vunpack.c.h.b16 %v69
    %v226 = vunpack.c.l.b16 %v70
    %v227 = vunpack.c.h.b16 %v70
    %v228 = vunpack.c.l.b16 %v71
    %v229 = vunpack.c.h.b16 %v71
    %v230 = vunpack.c.l.b16 %v72
    %v231 = vunpack.c.h.b16 %v72
    %v232 = vunpack.c.l.b16 %v73
    %v233 = vunpack.c.h.b16 %v73
    %v234 = vunpack.c.l.b16 %v74
    %v235 = vunpack.c.h.b16 %v74
    %v236 = vunpack.c.l.b16 %v75
    %v237 = vunpack.c.h.b16 %v75
    %v238 = vunpack.c.l.b16 %v76
    %v239 = vunpack.c.h.b16 %v76
    %v240 = vunpack.c.l.b16 %v77
    %v241 = vunpack.c.h.b16 %v77
    %v242 = vunpack.c.l.b16 %v78
    %v243 = vunpack.c.h.b16 %v78
    %v244 = vunpack.c.l.b16 %v79
    %v245 = vunpack.c.h.b16 %v79
    %v246 = vunpack.c.l.b16 %v80
    %v247 = vunpack.c.h.b16 %v80
    %v248 = vunpack.c.l.b16 %v81
    %v249 = vunpack.c.h.b16 %v81
    %v250 = vunpack.c.l.b16 %v82
    %v251 = vunpack.c.h.b16 %v82
    %v252 = vunpack.c.l.b16 %v83
    %v253 = vunpack.c.h.b16 %v83
    %v254 = vunpack.c.l.b16 %v84
    %v255 = vunpack.c.h.b16 %v84
    %v256 = vunpack.c.l.b16 %v85
    %v257 = vunpack.c.h.b16 %v85
    %v258 = vunpack.c.l.b16 %v86
    %v259 = vunpack.c.h.b16 %v86
    %v260 = vunpack.c.l.b16 %v87
    %v261 = vunpack.c.h.b16 %v87
    %v262 = vunpack.c.l.b16 %v88
    %v263 = vunpack.c.h.b16 %v88
    %v264 = vunpack.c.l.b16 %v89
    %v265 = vunpack.c.h.b16 %v89
    %v266 = vunpack.c.l.b16 %v90
    %v267 = vunpack.c.h.b16 %v90
    %v268 = vunpack.c.l.b16 %v91
    %v269 = vunpack.c.h.b16 %v91
    %v270 = vunpack.c.l.b16 %v92
    %v271 = vunpack.c.h.b16 %v92
    %v272 = vunpack.c.l.b16 %v93
    %v273 = vunpack.c.h.b16 %v93
    %v274 = vunpack.c.l.b16 %v94
    %v275 = vunpack.c.h.b16 %v94
    %v276 = vunpack.c.l.b16 %v95
    %v277 = vunpack.c.h.b16 %v95
    %v278 = vunpack.c.l.b16 %v96
    %v279 = vunpack.c.h.b16 %v96
    %v280 = vunpack.c.l.b16 %v97
    %v281 = vunpack.c.h.b16 %v97
    %v282 = vunpack.c.l.b16 %v98
    %v283 = vunpack.c.h.b16 %v98
    %v284 = vunpack.c.l.b16 %v99
    %v285 = vunpack.c.h.b16 %v99
    %v286 = vunpack.c.l.b16 %v100
    %v287 = vunpack.c.h.b16 %v100
    %v288 = vunpack.c.l.b16 %v101
    %v289 = vunpack.c.h.b16 %v101
    %v290 = vunpack.c.l.b16 %v102
    %v291 = vunpack.c.h.b16 %v102
    %v292 = vunpack.c.l.b16 %v103
    %v293 = vunpack.c.h.b16 %v103
    %v294 = vunpack.c.l.b16 %v104
    %v295 = vunpack.c.h.b16 %v104
    %v296 = vunpack.c.l.b16 %v105
    %v297 = vunpack.c.h.b16 %v105
    %v298 = vunpack.c.l.b16 %v106
    %v299 = vunpack.c.h.b16 %v106
    %v300 = vunpack.c.l.b16 %v107
    %v301 = vunpack.c.h.b16 %v107
    %v302 = vunpack.c.l.b16 %v108
    %v303 = vunpack.c.h.b16 %v108
    %v304 = vunpack.c.l.b16 %v109
    %v305 = vunpack.c.h.b16 %v109
    %v306 = vunpack.c.l.b16 %v110
    %v307 = vunpack.c.h.b16 %v110
    %v308 = vunpack.c.l.b16 %v111
    %v309 = vunpack.c.h.b16 %v111
    %v310 = vunpack.c.l.b16 %v112
    %v311 = vunpack.c.h.b16 %v112
    %v312 = vunpack.c.l.b16 %v113
    %v313 = vunpack.c.h.b16 %v113
    %v314 = vunpack.c.l.b16 %v114
    %v315 = vunpack.c.h.b16 %v114
    %v316 = vunpack.c.l.b16 %v115
    %v317 = vunpack.c.h.b16 %v115
    %v318 = vunpack.c.l.b16 %v116
    %v319 = vunpack.c.h.b16 %v116
    %v320 = vunpack.c.l.b16 %v117
    %v321 = vunpack.c.h.b16 %v117
    %v322 = vunpack.c.l.b16 %v118
    %v323 = vunpack.c.h.b16 %v118
    %v324 = vunpack.c.l.b16 %v119
    %v325 = vunpack.c.h.b16 %v119
    %v326 = vunpack.c.l.b16 %v120
    %v327 = vunpack.c.h.b16 %v120
    %v328 = vunpack.c.l.b16 %v121
    %v329 = vunpack.c.h.b16 %v121
    %v330 = vunpack.c.l.b16 %v122
    %v331 = vunpack.c.h.b16 %v122
    %v332 = vunpack.c.l.b16 %v123
    %v333 = vunpack.c.h.b16 %v123
    %v334 = vunpack.c.l.b16 %v124
    %v335 = vunpack.c.h.b16 %v124
    %v336 = vunpack.c.l.b16 %v125
    %v337 = vunpack.c.h.b16 %v125
    %v338 = vpack.c.b16 %v214, %v210
    %v339 = vpack.c.b16 %v215, %v211
    %v340 = vpack.c.b16 %v216, %v212
    %v341 = vpack.c.b16 %v217, %v213
    %v342 = vpack.c.b16 %v222, %v218
    %v343 = vpack.c.b16 %v223, %v219
    %v344 = vpack.c.b16 %v224, %v220
    %v345 = vpack.c.b16 %v225, %v221
    %v346 = vpack.c.b16 %v230, %v226
    %v347 = vpack.c.b16 %v231, %v227
    %v348 = vpack.c.b16 %v232, %v228
    %v349 = vpack.c.b16 %v233, %v229
    %v350 = vpack.c.b16 %v238, %v234
    %v351 = vpack.c.b16 %v239, %v235
    %v352 = vpack.c.b16 %v240, %v236
    %v353 = vpack.c.b16 %v241, %v237
    %v354 = vpack.c.b16 %v246, %v242
    %v355 = vpack.c.b16 %v247, %v243
    %v356 = vpack.c.b16 %v248, %v244
    %v357 = vpack.c.b16 %v249, %v245
    %v358 = vpack.c.b16 %v254, %v250
    %v359 = vpack.c.b16 %v255, %v251
    %v360 = vpack.c.b16 %v256, %v252
    %v361 = vpack.c.b16 %v257, %v253
    %v362 = vpack.c.b16 %v262, %v258
    %v363 = vpack.c.b16 %v263, %v259
    %v364 = vpack.c.b16 %v264, %v260
    %v365 = vpack.c.b16 %v265, %v261
    %v366 = vpack.c.b16 %v270, %v266
    %v367 = vpack.c.b16 %v271, %v267
    %v368 = vpack.c.b16 %v272, %v268
    %v369 = vpack.c.b16 %v273, %v269
    %v370 = vpack.c.b16 %v278, %v274
    %v371 = vpack.c.b16 %v279, %v275
    %v372 = vpack.c.b16 %v280, %v276
    %v373 = vpack.c.b16 %v281, %v277
    %v374 = vpack.c.b16 %v286, %v282
    %v375 = vpack.c.b16 %v287, %v283
    %v376 = vpack.c.b16 %v288, %v284
    %v377 = vpack.c.b16 %v289, %v285
    %v378 = vpack.c.b16 %v294, %v290
    %v379 = vpack.c.b16 %v295, %v291
    %v380 = vpack.c.b16 %v296, %v292
    %v381 = vpack.c.b16 %v297, %v293
    %v382 = vpack.c.b16 %v302, %v298
    %v383 = vpack.c.b16 %v303, %v299
    %v384 = vpack.c.b16 %v304, %v300
    %v385 = vpack.c.b16 %v305, %v301
    %v386 = vpack.c.b16 %v310, %v306
    %v387 = vpack.c.b16 %v311, %v307
    %v388 = vpack.c.b16 %v312, %v308
    %v389 = vpack.c.b16 %v313, %v309
    %v390 = vpack.c.b16 %v318, %v314
    %v391 = vpack.c.b16 %v319, %v315
    %v392 = vpack.c.b16 %v320, %v316
    %v393 = vpack.c.b16 %v321, %v317
    %v394 = vpack.c.b16 %v326, %v322
    %v395 = vpack.c.b16 %v327, %v323
    %v396 = vpack.c.b16 %v328, %v324
    %v397 = vpack.c.b16 %v329, %v325
    %v398 = vpack.c.b16 %v334, %v330
    %v399 = vpack.c.b16 %v335, %v331
    %v400 = vpack.c.b16 %v336, %v332
    %v401 = vpack.c.b16 %v337, %v333
    %466 = vmatprep.subr.bf16.mxu0 %v339
    %467 = vmatpush1.bf16.msra.mxu0 %v338
    %468 = vmatprep.subr.bf16.mxu0 %v343
    %469 = vmatpush1.bf16.msra.mxu0 %v342
    %470 = vmatprep.subr.bf16.mxu0 %v347
    %471 = vmatpush1.bf16.msra.mxu0 %v346
    %472 = vmatprep.subr.bf16.mxu0 %v351
    %473 = vmatpush1.bf16.msra.mxu0 %v350
    %474 = vmatprep.subr.bf16.mxu0 %v355
    %475 = vmatpush1.bf16.msra.mxu0 %v354
    %476 = vmatprep.subr.bf16.mxu0 %v359
    %477 = vmatpush1.bf16.msra.mxu0 %v358
    %478 = vmatprep.subr.bf16.mxu0 %v363
    %479 = vmatpush1.bf16.msra.mxu0 %v362
    %480 = vmatprep.subr.bf16.mxu0 %v367
    %481 = vmatpush1.bf16.msra.mxu0 %v366
    %482 = vmatprep.subr.bf16.mxu0 %v371
    %483 = vmatpush1.bf16.msra.mxu0 %v370
    %484 = vmatprep.subr.bf16.mxu0 %v375
    %485 = vmatpush1.bf16.msra.mxu0 %v374
    %486 = vmatprep.subr.bf16.mxu0 %v379
    %487 = vmatpush1.bf16.msra.mxu0 %v378
    %488 = vmatprep.subr.bf16.mxu0 %v383
    %489 = vmatpush1.bf16.msra.mxu0 %v382
    %490 = vmatprep.subr.bf16.mxu0 %v387
    %491 = vmatpush1.bf16.msra.mxu0 %v386
    %492 = vmatprep.subr.bf16.mxu0 %v391
    %493 = vmatpush1.bf16.msra.mxu0 %v390
    %494 = vmatprep.subr.bf16.mxu0 %v395
    %495 = vmatpush1.bf16.msra.mxu0 %v394
    %496 = vmatprep.subr.bf16.mxu0 %v399
    %497 = vmatpush1.bf16.msra.mxu0 %v398
    %498 = vmatprep.mubr.bf16.mxu0 %v139
    %499 = vmatmul.mubr.bf16.gmra.mrb[0].mxu0 %v138
    %v500 = vpop.f32.mrb[0].mxu0
    %v501 = vadd.f32 0.0, %v500
    %v502 = vpop.f32.mrb[0].mxu0
    %v503 = vadd.f32 0.0, %v502
    %v504 = vpop.f32.mrb[0].mxu0
    %v505 = vadd.f32 0.0, %v504
    %v506 = vpop.f32.mrb[0].mxu0
    %v507 = vadd.f32 0.0, %v506
    %508 = vmatprep.mubr.bf16.mxu0 %v141
    %509 = vmatmul.mubr.bf16.gmra.mrb[0].mxu0 %v140
    %v510 = vpop.f32.mrb[0].mxu0
    %v511 = vadd.f32 0.0, %v510
    %v512 = vpop.f32.mrb[0].mxu0
    %v513 = vadd.f32 0.0, %v512
    %v514 = vpop.f32.mrb[0].mxu0
    %v515 = vadd.f32 0.0, %v514
    %v516 = vpop.f32.mrb[0].mxu0
    %v517 = vadd.f32 0.0, %v516
    %518 = vdwg.mxu0
    %519 = vmatprep.subr.bf16.mxu0 %v341
    %520 = vmatpush1.bf16.msra.mxu0 %v340
    %521 = vmatprep.subr.bf16.mxu0 %v345
    %522 = vmatpush1.bf16.msra.mxu0 %v344
    %523 = vmatprep.subr.bf16.mxu0 %v349
    %524 = vmatpush1.bf16.msra.mxu0 %v348
    %525 = vmatprep.subr.bf16.mxu0 %v353
    %526 = vmatpush1.bf16.msra.mxu0 %v352
    %527 = vmatprep.subr.bf16.mxu0 %v357
    %528 = vmatpush1.bf16.msra.mxu0 %v356
    %529 = vmatprep.subr.bf16.mxu0 %v361
    %530 = vmatpush1.bf16.msra.mxu0 %v360
    %531 = vmatprep.subr.bf16.mxu0 %v365
    %532 = vmatpush1.bf16.msra.mxu0 %v364
    %533 = vmatprep.subr.bf16.mxu0 %v369
    %534 = vmatpush1.bf16.msra.mxu0 %v368
    %535 = vmatprep.subr.bf16.mxu0 %v373
    %536 = vmatpush1.bf16.msra.mxu0 %v372
    %537 = vmatprep.subr.bf16.mxu0 %v377
    %538 = vmatpush1.bf16.msra.mxu0 %v376
    %539 = vmatprep.subr.bf16.mxu0 %v381
    %540 = vmatpush1.bf16.msra.mxu0 %v380
    %541 = vmatprep.subr.bf16.mxu0 %v385
    %542 = vmatpush1.bf16.msra.mxu0 %v384
    %543 = vmatprep.subr.bf16.mxu0 %v389
    %544 = vmatpush1.bf16.msra.mxu0 %v388
    %545 = vmatprep.subr.bf16.mxu0 %v393
    %546 = vmatpush1.bf16.msra.mxu0 %v392
    %547 = vmatprep.subr.bf16.mxu0 %v397
    %548 = vmatpush1.bf16.msra.mxu0 %v396
    %549 = vmatprep.subr.bf16.mxu0 %v401
    %550 = vmatpush1.bf16.msra.mxu0 %v400
    %551 = vmatprep.mubr.bf16.mxu0 %v139
    %552 = vmatmul.mubr.bf16.gmra.mrb[0].mxu0 %v138
    %v553 = vpop.f32.mrb[0].mxu0
    %v554 = vadd.f32 0.0, %v553
    %v555 = vpop.f32.mrb[0].mxu0
    %v556 = vadd.f32 0.0, %v555
    %v557 = vpop.f32.mrb[0].mxu0
    %v558 = vadd.f32 0.0, %v557
    %v559 = vpop.f32.mrb[0].mxu0
    %v560 = vadd.f32 0.0, %v559
    %561 = vmatprep.mubr.bf16.mxu0 %v141
    %562 = vmatmul.mubr.bf16.gmra.mrb[0].mxu0 %v140
    %v563 = vpop.f32.mrb[0].mxu0
    %v564 = vadd.f32 0.0, %v563
    %v565 = vpop.f32.mrb[0].mxu0
    %v566 = vadd.f32 0.0, %v565
    %v567 = vpop.f32.mrb[0].mxu0
    %v568 = vadd.f32 0.0, %v567
    %v569 = vpop.f32.mrb[0].mxu0
    %v570 = vadd.f32 0.0, %v569
    %571 = vdwg.mxu0
    %v572 = vlaneseq
    %v573 = vshrl.u32 %v572, 7
    %v574 = vsub.s32 0, %v573
    %v575 = vrot.slane %v54, %v574
    %v576 = vlaneseq
    %v577 = vshrl.u32 %v576, 7
    %v578 = vsub.s32 0, %v577
    %v579 = vrot.slane %v55, %v578
    %v580 = vlaneseq
    %v581 = vshrl.u32 %v580, 7
    %v582 = vsub.s32 0, %v581
    %v583 = vrot.slane %v56, %v582
    %v584 = vlaneseq
    %v585 = vshrl.u32 %v584, 7
    %v586 = vsub.s32 0, %v585
    %v587 = vrot.slane %v57, %v586
    %v588 = vadd.f32 %v501, %v575
    %v589 = vadd.f32 %v503, %v579
    %v590 = vadd.f32 %v554, %v583
    %v591 = vadd.f32 %v556, %v587
    %v592 = vadd.f32 %v505, %v575
    %v593 = vadd.f32 %v507, %v579
    %v594 = vadd.f32 %v558, %v583
    %v595 = vadd.f32 %v560, %v587
    %v596 = vadd.f32 %v511, %v575
    %v597 = vadd.f32 %v513, %v579
    %v598 = vadd.f32 %v564, %v583
    %v599 = vadd.f32 %v566, %v587
    %v600 = vadd.f32 %v515, %v575
    %v601 = vadd.f32 %v517, %v579
    %v602 = vadd.f32 %v568, %v583
    %v603 = vadd.f32 %v570, %v587
    %v604 = vlaneseq
    %v605 = vshrl.u32 %v604, 7
    %v606 = vsub.s32 3, %v605
    %v607 = vrot.slane %v54, %v606
    %v608 = vlaneseq
    %v609 = vshrl.u32 %v608, 7
    %v610 = vsub.s32 3, %v609
    %v611 = vrot.slane %v55, %v610
    %v612 = vlaneseq
    %v613 = vshrl.u32 %v612, 7
    %v614 = vsub.s32 3, %v613
    %v615 = vrot.slane %v56, %v614
    %v616 = vlaneseq
    %v617 = vshrl.u32 %v616, 7
    %v618 = vsub.s32 3, %v617
    %v619 = vrot.slane %v57, %v618
    %v620 = vmul.f32 %v588, %v607
    %v621 = vmul.f32 %v589, %v611
    %v622 = vmul.f32 %v590, %v615
    %v623 = vmul.f32 %v591, %v619
    %v624 = vmul.f32 %v592, %v607
    %v625 = vmul.f32 %v593, %v611
    %v626 = vmul.f32 %v594, %v615
    %v627 = vmul.f32 %v595, %v619
    %v628 = vmul.f32 %v596, %v607
    %v629 = vmul.f32 %v597, %v611
    %v630 = vmul.f32 %v598, %v615
    %v631 = vmul.f32 %v599, %v619
    %v632 = vmul.f32 %v600, %v607
    %v633 = vmul.f32 %v601, %v611
    %v634 = vmul.f32 %v602, %v615
    %v635 = vmul.f32 %v603, %v619
    %v636 = vadd.f32 %v620, %v621
    %v637 = vadd.f32 %v636, %v622
    %v638 = vadd.f32 %v637, %v623
    %639 = vadd.xlane.f32.xlu0 %v638
    %v640 = vpop.xlane.xlu0 %639
    %v641 = vadd.f32 %v624, %v625
    %v642 = vadd.f32 %v641, %v626
    %v643 = vadd.f32 %v642, %v627
    %644 = vadd.xlane.f32.xlu0 %v643
    %v645 = vpop.xlane.xlu0 %644
    %v646 = vadd.f32 %v628, %v629
    %v647 = vadd.f32 %v646, %v630
    %v648 = vadd.f32 %v647, %v631
    %649 = vadd.xlane.f32.xlu0 %v648
    %v650 = vpop.xlane.xlu0 %649
    %v651 = vadd.f32 %v632, %v633
    %v652 = vadd.f32 %v651, %v634
    %v653 = vadd.f32 %v652, %v635
    %654 = vadd.xlane.f32.xlu0 %v653
    %v655 = vpop.xlane.xlu0 %654
    %v656 = vadd.f32 %v640, %v645
    %v657 = vrot.slane %v656, 4
    %v658 = vadd.f32 %v656, %v657
    %v659 = vrot.slane %v658, 2
    %v660 = vadd.f32 %v658, %v659
    %v661 = vrot.slane %v660, 1
    %v662 = vadd.f32 %v660, %v661
    %v663 = vadd.f32 %v650, %v655
    %v664 = vrot.slane %v663, 4
    %v665 = vadd.f32 %v663, %v664
    %v666 = vrot.slane %v665, 2
    %v667 = vadd.f32 %v665, %v666
    %v668 = vrot.slane %v667, 1
    %v669 = vadd.f32 %v667, %v668
    %v670 = vmul.f32 %v662, 0.00012207031
    %v671 = vmul.f32 %v669, 0.00012207031
    %v672 = vsub.f32 %v588, %v670
    %v673 = vsub.f32 %v589, %v670
    %v674 = vsub.f32 %v590, %v670
    %v675 = vsub.f32 %v591, %v670
    %v676 = vsub.f32 %v592, %v670
    %v677 = vsub.f32 %v593, %v670
    %v678 = vsub.f32 %v594, %v670
    %v679 = vsub.f32 %v595, %v670
    %v680 = vsub.f32 %v596, %v671
    %v681 = vsub.f32 %v597, %v671
    %v682 = vsub.f32 %v598, %v671
    %v683 = vsub.f32 %v599, %v671
    %v684 = vsub.f32 %v600, %v671
    %v685 = vsub.f32 %v601, %v671
    %v686 = vsub.f32 %v602, %v671
    %v687 = vsub.f32 %v603, %v671
    %v688 = vmul.f32 %v672, %v672
    %v689 = vmul.f32 %v673, %v673
    %v690 = vmul.f32 %v674, %v674
    %v691 = vmul.f32 %v675, %v675
    %v692 = vmul.f32 %v676, %v676
    %v693 = vmul.f32 %v677, %v677
    %v694 = vmul.f32 %v678, %v678
    %v695 = vmul.f32 %v679, %v679
    %v696 = vmul.f32 %v680, %v680
    %v697 = vmul.f32 %v681, %v681
    %v698 = vmul.f32 %v682, %v682
    %v699 = vmul.f32 %v683, %v683
    %v700 = vmul.f32 %v684, %v684
    %v701 = vmul.f32 %v685, %v685
    %v702 = vmul.f32 %v686, %v686
    %v703 = vmul.f32 %v687, %v687
    %v704 = vmul.f32 %v688, %v607
    %v705 = vmul.f32 %v689, %v611
    %v706 = vmul.f32 %v690, %v615
    %v707 = vmul.f32 %v691, %v619
    %v708 = vmul.f32 %v692, %v607
    %v709 = vmul.f32 %v693, %v611
    %v710 = vmul.f32 %v694, %v615
    %v711 = vmul.f32 %v695, %v619
    %v712 = vmul.f32 %v696, %v607
    %v713 = vmul.f32 %v697, %v611
    %v714 = vmul.f32 %v698, %v615
    %v715 = vmul.f32 %v699, %v619
    %v716 = vmul.f32 %v700, %v607
    %v717 = vmul.f32 %v701, %v611
    %v718 = vmul.f32 %v702, %v615
    %v719 = vmul.f32 %v703, %v619
    %v720 = vadd.f32 %v704, %v705
    %v721 = vadd.f32 %v720, %v706
    %v722 = vadd.f32 %v721, %v707
    %723 = vadd.xlane.f32.xlu0 %v722
    %v724 = vpop.xlane.xlu0 %723
    %v725 = vadd.f32 %v708, %v709
    %v726 = vadd.f32 %v725, %v710
    %v727 = vadd.f32 %v726, %v711
    %728 = vadd.xlane.f32.xlu0 %v727
    %v729 = vpop.xlane.xlu0 %728
    %v730 = vadd.f32 %v712, %v713
    %v731 = vadd.f32 %v730, %v714
    %v732 = vadd.f32 %v731, %v715
    %733 = vadd.xlane.f32.xlu0 %v732
    %v734 = vpop.xlane.xlu0 %733
    %v735 = vadd.f32 %v716, %v717
    %v736 = vadd.f32 %v735, %v718
    %v737 = vadd.f32 %v736, %v719
    %738 = vadd.xlane.f32.xlu0 %v737
    %v739 = vpop.xlane.xlu0 %738
    %v740 = vadd.f32 %v724, %v729
    %v741 = vrot.slane %v740, 4
    %v742 = vadd.f32 %v740, %v741
    %v743 = vrot.slane %v742, 2
    %v744 = vadd.f32 %v742, %v743
    %v745 = vrot.slane %v744, 1
    %v746 = vadd.f32 %v744, %v745
    %v747 = vadd.f32 %v734, %v739
    %v748 = vrot.slane %v747, 4
    %v749 = vadd.f32 %v747, %v748
    %v750 = vrot.slane %v749, 2
    %v751 = vadd.f32 %v749, %v750
    %v752 = vrot.slane %v751, 1
    %v753 = vadd.f32 %v751, %v752
    %v754 = vmul.f32 %v746, 0.00012207031
    %v755 = vmul.f32 %v753, 0.00012207031
    %v756 = vadd.f32 %v754, 1e-05
    %v757 = vadd.f32 %v755, 1e-05
    %v758 = vrsqrt.pop %v756
    %v759 = vrsqrt.pop %v757
    %v760 = vmul.f32 %v672, %v758
    %v761 = vmul.f32 %v673, %v758
    %v762 = vmul.f32 %v674, %v758
    %v763 = vmul.f32 %v675, %v758
    %v764 = vmul.f32 %v676, %v758
    %v765 = vmul.f32 %v677, %v758
    %v766 = vmul.f32 %v678, %v758
    %v767 = vmul.f32 %v679, %v758
    %v768 = vmul.f32 %v680, %v759
    %v769 = vmul.f32 %v681, %v759
    %v770 = vmul.f32 %v682, %v759
    %v771 = vmul.f32 %v683, %v759
    %v772 = vmul.f32 %v684, %v759
    %v773 = vmul.f32 %v685, %v759
    %v774 = vmul.f32 %v686, %v759
    %v775 = vmul.f32 %v687, %v759
    %v776 = vlaneseq
    %v777 = vshrl.u32 %v776, 7
    %v778 = vsub.s32 1, %v777
    %v779 = vrot.slane %v54, %v778
    %v780 = vlaneseq
    %v781 = vshrl.u32 %v780, 7
    %v782 = vsub.s32 1, %v781
    %v783 = vrot.slane %v55, %v782
    %v784 = vlaneseq
    %v785 = vshrl.u32 %v784, 7
    %v786 = vsub.s32 1, %v785
    %v787 = vrot.slane %v56, %v786
    %v788 = vlaneseq
    %v789 = vshrl.u32 %v788, 7
    %v790 = vsub.s32 1, %v789
    %v791 = vrot.slane %v57, %v790
    %v792 = vmul.f32 %v760, %v779
    %v793 = vmul.f32 %v761, %v783
    %v794 = vmul.f32 %v762, %v787
    %v795 = vmul.f32 %v763, %v791
    %v796 = vmul.f32 %v764, %v779
    %v797 = vmul.f32 %v765, %v783
    %v798 = vmul.f32 %v766, %v787
    %v799 = vmul.f32 %v767, %v791
    %v800 = vmul.f32 %v768, %v779
    %v801 = vmul.f32 %v769, %v783
    %v802 = vmul.f32 %v770, %v787
    %v803 = vmul.f32 %v771, %v791
    %v804 = vmul.f32 %v772, %v779
    %v805 = vmul.f32 %v773, %v783
    %v806 = vmul.f32 %v774, %v787
    %v807 = vmul.f32 %v775, %v791
    %v808 = vlaneseq
    %v809 = vshrl.u32 %v808, 7
    %v810 = vsub.s32 2, %v809
    %v811 = vrot.slane %v54, %v810
    %v812 = vlaneseq
    %v813 = vshrl.u32 %v812, 7
    %v814 = vsub.s32 2, %v813
    %v815 = vrot.slane %v55, %v814
    %v816 = vlaneseq
    %v817 = vshrl.u32 %v816, 7
    %v818 = vsub.s32 2, %v817
    %v819 = vrot.slane %v56, %v818
    %v820 = vlaneseq
    %v821 = vshrl.u32 %v820, 7
    %v822 = vsub.s32 2, %v821
    %v823 = vrot.slane %v57, %v822
    %v824 = vadd.f32 %v792, %v811
    %v825 = vadd.f32 %v793, %v815
    %v826 = vadd.f32 %v794, %v819
    %v827 = vadd.f32 %v795, %v823
    %v828 = vadd.f32 %v796, %v811
    %v829 = vadd.f32 %v797, %v815
    %v830 = vadd.f32 %v798, %v819
    %v831 = vadd.f32 %v799, %v823
    %v832 = vadd.f32 %v800, %v811
    %v833 = vadd.f32 %v801, %v815
    %v834 = vadd.f32 %v802, %v819
    %v835 = vadd.f32 %v803, %v823
    %v836 = vadd.f32 %v804, %v811
    %v837 = vadd.f32 %v805, %v815
    %v838 = vadd.f32 %v806, %v819
    %v839 = vadd.f32 %v807, %v823
    %v840 = vmax.f32 %v824, 0.0
    %v841 = vmax.f32 %v825, 0.0
    %v842 = vmax.f32 %v826, 0.0
    %v843 = vmax.f32 %v827, 0.0
    %v844 = vmax.f32 %v828, 0.0
    %v845 = vmax.f32 %v829, 0.0
    %v846 = vmax.f32 %v830, 0.0
    %v847 = vmax.f32 %v831, 0.0
    %v848 = vmax.f32 %v832, 0.0
    %v849 = vmax.f32 %v833, 0.0
    %v850 = vmax.f32 %v834, 0.0
    %v851 = vmax.f32 %v835, 0.0
    %v852 = vmax.f32 %v836, 0.0
    %v853 = vmax.f32 %v837, 0.0
    %v854 = vmax.f32 %v838, 0.0
    %v855 = vmax.f32 %v839, 0.0
    %856 = vst [vmem:[#allocation8] sm:$0xff] %v840
    %857 = vst [vmem:[#allocation8 + $0x8] sm:$0xff] %v841
    %858 = vst [vmem:[#allocation8 + $0x10] sm:$0xff] %v842
    %859 = vst [vmem:[#allocation8 + $0x18] sm:$0xff] %v843
    %860 = vst [vmem:[#allocation8 + $0x20] sm:$0xff] %v844
    %861 = vst [vmem:[#allocation8 + $0x28] sm:$0xff] %v845
    %862 = vst [vmem:[#allocation8 + $0x30] sm:$0xff] %v846
    %863 = vst [vmem:[#allocation8 + $0x38] sm:$0xff] %v847
    %864 = vst [vmem:[#allocation8 + $0x40] sm:$0xff] %v848
    %865 = vst [vmem:[#allocation8 + $0x48] sm:$0xff] %v849
    %866 = vst [vmem:[#allocation8 + $0x50] sm:$0xff] %v850
    %867 = vst [vmem:[#allocation8 + $0x58] sm:$0xff] %v851
    %868 = vst [vmem:[#allocation8 + $0x60] sm:$0xff] %v852
    %869 = vst [vmem:[#allocation8 + $0x68] sm:$0xff] %v853
    %870 = vst [vmem:[#allocation8 + $0x70] sm:$0xff] %v854
    %871 = vst [vmem:[#allocation8 + $0x78] sm:$0xff] %v855
    // Predicated region
    $region26: #{tpu_custom_call.1} parent=1 // pred_check
      _
    $region27: #{tpu_custom_call.1} parent=1 // pred_check_branch
      %873 = sbr.rel (0) target = $region29
    $region28: #{tpu_custom_call.1} parent=1 // pred_region
      %s875 = ssub.s32 2048, 2048
      %876 = vsyncadd [#allocation4], %s875
      %s877 = sshll.u32 [#allocation8], 4
      %s878 = int_to_ptr.vmem [resolvable:$true] %s877
      %883 = dma.vmem_to_hbm [thread:$0]  %s878, 2048, %s3, [#allocation4], 512, 512, 32
    $region29: #{tpu_custom_call.1} parent=1 // pred_fallthru
      _
    // Predicated region
    $region30: #{tpu_custom_call.1} parent=1 // pred_check
      _
    $region31: #{tpu_custom_call.1} parent=1 // pred_check_branch
      %885 = sbr.rel (0) target = $region33
    $region32: #{tpu_custom_call.1} parent=1 // pred_region
      %886 = dma.done [#allocation4], 2048
    $region33: #{tpu_custom_call.1} parent=1 // pred_fallthru
      _
    %887 = vsyncpa [#allocation3], 1
    %888 = vsyncpa [#allocation6], 1
    %889 = vsyncpa [#allocation4], 1

</llo_original>
